<compile_context>
chip_gen: v7x
topology: tpu7x:2x2x1
jax: 0.10.0
libtpu: 0.0.40
codegen_flags: <defaults>
</compile_context>

<pallas_src>
import jax
import jax.numpy as jnp
from jax.experimental import pallas as pl
from jax.experimental.pallas import tpu as pltpu

INPUT_SIZE = 4
HIDDEN_SIZE = 10
NUM_CLASSES = 3


def iris_mlp_kernel(xt_ref, w1b_ref, w2b_ref, out_ref):
    # xt_ref:  [F, TB]      (batch on lanes)
    # w1b_ref: [H, F+1]     (fc1 weight with bias folded into last column)
    # w2b_ref: [C, H+1]     (fc2 weight with bias folded into last column)
    # out_ref: [C, TB]
    x = xt_ref[...]                                       # [4, TB]

    w1b = w1b_ref[...]                                    # [10, 5]
    w1 = w1b[:, :INPUT_SIZE]                              # [10, 4]
    b1 = w1b[:, INPUT_SIZE:]                              # [10, 1] -> lane bcast
    h = jnp.dot(w1, x, preferred_element_type=jnp.float32) + b1   # [10, TB]
    h = jnp.maximum(h, 0.0)                               # ReLU on full 128 lanes

    w2b = w2b_ref[...]                                    # [3, 11]
    w2 = w2b[:, :HIDDEN_SIZE]                             # [3, 10]
    b2 = w2b[:, HIDDEN_SIZE:]                             # [3, 1]
    o = jnp.dot(w2, h, preferred_element_type=jnp.float32) + b2   # [3, TB]

    out_ref[...] = o.astype(out_ref.dtype)


def iris_classifier(x, w1, b1, w2, b2, *, tb=512):
    """x: [B, F]; w1: [H, F]; b1: [H]; w2: [C, H]; b2: [C] (PyTorch layout).

    Returns logits [B, C], identical to fc2(relu(fc1(x))).
    """
    B = x.shape[0]

    # Pack bias into an extra weight column (one-time, outside the kernel).
    w1b = jnp.concatenate([w1, b1[:, None]], axis=1).astype(jnp.float32)
    w2b = jnp.concatenate([w2, b2[:, None]], axis=1).astype(jnp.float32)

    # Batch tile: multiple of 128 lanes; don't over-pad tiny batches.
    tb = min(tb, ((B + 127) // 128) * 128)
    n_blocks = pl.cdiv(B, tb)
    b_pad = n_blocks * tb

    # Layout plumbing: batch onto the lane axis, pad up to the tile boundary.
    xt = jnp.transpose(x).astype(jnp.float32)             # [F, B]
    if b_pad != B:
        xt = jnp.pad(xt, ((0, 0), (0, b_pad - B)))

    out_t = pl.pallas_call(
        iris_mlp_kernel,
        out_shape=jax.ShapeDtypeStruct((NUM_CLASSES, b_pad), jnp.float32),
        grid=(n_blocks,),
        in_specs=[
            pl.BlockSpec((INPUT_SIZE, tb), lambda i: (0, i)),
            pl.BlockSpec((HIDDEN_SIZE, INPUT_SIZE + 1), lambda i: (0, 0)),
            pl.BlockSpec((NUM_CLASSES, HIDDEN_SIZE + 1), lambda i: (0, 0)),
        ],
        out_specs=pl.BlockSpec((NUM_CLASSES, tb), lambda i: (0, i)),
        compiler_params=pltpu.CompilerParams(
            dimension_semantics=("parallel",)),
    )(xt, w1b, w2b)

    return jnp.transpose(out_t[:, :B])                    # [B, C]


def init_params(key):
    # PyTorch nn.Linear default init: U(-1/sqrt(fan_in), 1/sqrt(fan_in)),
    # weight stored [out, in] exactly like nn.Linear.weight.
    k1, k2, k3, k4 = jax.random.split(key, 4)
    bound1 = 1.0 / jnp.sqrt(INPUT_SIZE)
    bound2 = 1.0 / jnp.sqrt(HIDDEN_SIZE)
    w1 = jax.random.uniform(k1, (HIDDEN_SIZE, INPUT_SIZE), jnp.float32,
                            -bound1, bound1)
    b1 = jax.random.uniform(k2, (HIDDEN_SIZE,), jnp.float32, -bound1, bound1)
    w2 = jax.random.uniform(k3, (NUM_CLASSES, HIDDEN_SIZE), jnp.float32,
                            -bound2, bound2)
    b2 = jax.random.uniform(k4, (NUM_CLASSES,), jnp.float32, -bound2, bound2)
    return w1, b1, w2, b2


if __name__ == "__main__":
    key = jax.random.PRNGKey(0)
    pkey, xkey = jax.random.split(key)
    w1, b1, w2, b2 = init_params(pkey)

    batch = 256                       # 2 grid steps at tb=128: exercises tiling
    x = jax.random.normal(xkey, (batch, INPUT_SIZE), jnp.float32)

    out = iris_classifier(x, w1, b1, w2, b2, tb=128)
    out = jax.block_until_ready(out)

    # Pure-JAX reference of the PyTorch forward pass.
    ref = jnp.maximum(x @ w1.T + b1, 0.0) @ w2.T + b2
    assert out.shape == (batch, NUM_CLASSES)
    assert jnp.allclose(out, ref, atol=1e-5, rtol=1e-5)

    print("KERNEL_OK")
</pallas_src>

<mosaic_0001>
module attributes {stable_mosaic.version = 11 : i64} {
  func.func @iris_mlp_kernel(%arg0: i32, %arg1: memref<4x128xf32, #tpu.memory_space<vmem>>, %arg2: memref<10x5xf32, #tpu.memory_space<vmem>>, %arg3: memref<3x11xf32, #tpu.memory_space<vmem>>, %arg4: memref<3x128xf32, #tpu.memory_space<vmem>>) attributes {dimension_semantics = [#tpu.dimension_semantics<parallel>], iteration_bounds = array<i64: 2>, scalar_prefetch = 0 : i64, scratch_operands = 0 : i64, tpu.core_type = #tpu.core_type<tc>, window_params = [{transform_indices = @transform_0, window_bounds = array<i64: 4, 128>}, {pipeline_mode = #tpu.pipeline_mode<synchronous>, transform_indices = @transform_1, window_bounds = array<i64: 10, 5>}, {pipeline_mode = #tpu.pipeline_mode<synchronous>, transform_indices = @transform_2, window_bounds = array<i64: 3, 11>}, {transform_indices = @transform_3, window_bounds = array<i64: 3, 128>}]} {
    %c0 = arith.constant 0 : index
    %c0_0 = arith.constant 0 : index
    %0 = vector.load %arg1[%c0, %c0_0] : memref<4x128xf32, #tpu.memory_space<vmem>>, vector<4x128xf32>
    %c0_1 = arith.constant 0 : index
    %c0_2 = arith.constant 0 : index
    %1 = vector.load %arg2[%c0_1, %c0_2] : memref<10x5xf32, #tpu.memory_space<vmem>>, vector<10x5xf32>
    %2 = vector.extract_strided_slice %1 {offsets = [0, 0], sizes = [10, 4], strides = [1, 1]} : vector<10x5xf32> to vector<10x4xf32>
    %3 = vector.extract_strided_slice %1 {offsets = [0, 4], sizes = [10, 1], strides = [1, 1]} : vector<10x5xf32> to vector<10x1xf32>
    %cst = arith.constant dense<0.000000e+00> : vector<10x128xf32>
    %4 = tpu.matmul %2, %0, %cst {dimension_numbers = #tpu.dot_dimension_numbers<[1], [0], [0], [1], [0, 0, 1, 1], [], []>} : vector<10x4xf32>, vector<4x128xf32>, vector<10x128xf32> -> vector<10x128xf32>
    %5 = vector.broadcast %3 : vector<10x1xf32> to vector<10x128xf32>
    %6 = arith.addf %4, %5 : vector<10x128xf32>
    %cst_3 = arith.constant 0.000000e+00 : f32
    %7 = vector.broadcast %cst_3 : f32 to vector<10x128xf32>
    %8 = arith.maximumf %6, %7 : vector<10x128xf32>
    %c0_4 = arith.constant 0 : index
    %c0_5 = arith.constant 0 : index
    %9 = vector.load %arg3[%c0_4, %c0_5] : memref<3x11xf32, #tpu.memory_space<vmem>>, vector<3x11xf32>
    %10 = vector.extract_strided_slice %9 {offsets = [0, 0], sizes = [3, 10], strides = [1, 1]} : vector<3x11xf32> to vector<3x10xf32>
    %11 = vector.extract_strided_slice %9 {offsets = [0, 10], sizes = [3, 1], strides = [1, 1]} : vector<3x11xf32> to vector<3x1xf32>
    %cst_6 = arith.constant dense<0.000000e+00> : vector<3x128xf32>
    %12 = tpu.matmul %10, %8, %cst_6 {dimension_numbers = #tpu.dot_dimension_numbers<[1], [0], [0], [1], [0, 0, 1, 1], [], []>} : vector<3x10xf32>, vector<10x128xf32>, vector<3x128xf32> -> vector<3x128xf32>
    %13 = vector.broadcast %11 : vector<3x1xf32> to vector<3x128xf32>
    %14 = arith.addf %12, %13 : vector<3x128xf32>
    %c0_7 = arith.constant 0 : index
    %c0_8 = arith.constant 0 : index
    %15 = vector.load %arg4[%c0_7, %c0_8] : memref<3x128xf32, #tpu.memory_space<vmem>>, vector<3x128xf32>
    tpu.vector_store %arg4[%c0_7, %c0_8], %14 {strides = array<i32>} : memref<3x128xf32, #tpu.memory_space<vmem>>, vector<3x128xf32>,
    return
  }
  func.func @transform_0(%arg0: i32) -> (i32, i32) {
    %c0_i32 = arith.constant 0 : i32
    %c0_i32_0 = arith.constant 0 : i32
    return %c0_i32, %arg0 : i32, i32
  }
  func.func @transform_1(%arg0: i32) -> (i32, i32) {
    %c0_i32 = arith.constant 0 : i32
    %c0_i32_0 = arith.constant 0 : i32
    %c0_i32_1 = arith.constant 0 : i32
    return %c0_i32, %c0_i32_0 : i32, i32
  }
  func.func @transform_2(%arg0: i32) -> (i32, i32) {
    %c0_i32 = arith.constant 0 : i32
    %c0_i32_0 = arith.constant 0 : i32
    %c0_i32_1 = arith.constant 0 : i32
    return %c0_i32, %c0_i32_0 : i32, i32
  }
  func.func @transform_3(%arg0: i32) -> (i32, i32) {
    %c0_i32 = arith.constant 0 : i32
    %c0_i32_0 = arith.constant 0 : i32
    return %c0_i32, %arg0 : i32, i32
  }
}

</mosaic_0001>

<llo_original>
// kernel: tpu_custom_call.1
$region0: #{tpu_custom_call.1}
  #allocation0 [shape = 'u32[]', space=smem, size = 0x4, offset = 0x4, fixed_abs, tag = 'smem constant byte address 0x4 - core index']
  #allocation1 [shape = 'u32[144,128]{1,0:T(1,128)}', space=vmem, size = 0x12000, scoped, tag = 'internal scratch']
  %s0 = inlined_call_operand.vmem [shape: f32[4,256], index: 0, kind: input, shape index: {}]
  %s1 = inlined_call_operand.vmem [shape: f32[10,5], index: 1, kind: input, shape index: {}]
  %s2 = inlined_call_operand.vmem [shape: f32[3,11], index: 2, kind: input, shape index: {}]
  %s3 = inlined_call_operand.hbm [shape: f32[3,256], index: 3, kind: output, shape index: {}]
  %s4 = sld [smem:[#allocation0]]
  $region45: #{tpu_custom_call.1} parent=0
    _
  %s6 = ssub.s32 1, %s4
  %s7 = scalar_select 0, %s6, %s4
  $region1: #{tpu_custom_call.1} parent=0
    #allocation2 [shape = 'u8[4096]{0}', space=vmem, size = 0x1000, scoped, tag = 'output window, operand 0']
    #allocation3 [shape = 's32[2]{0}', space=sflag, size = 0x8, scoped, tag = 'scoped memory for tpu_custom_call.1']
    %8 = vsyncpa [#allocation3], 0
    %s9 = scalar_lea.sflag [#allocation3], 1
    %10 = vsyncpa %s9, 0
    loop: start=0, step=1, limit=4
    $region2: #{tpu_custom_call.1} parent=1 // loop_pre_header
      _
    $region3: #{tpu_custom_call.1} parent=1 // loop_header
      %s12 = sphi 0, %s16
      %p13 = scmp.ge.s32.totalorder %s12, 4
      %s22 = sphi 0, %s24
      %s25 = sphi 0, %s22
      %s26 = sphi 0, %s25
      %s42 = sphi 0, %s26
      %s46 = sphi 0, %s46
      %s48 = sphi 0, %s46
      %s49 = sphi 0, %s48
      %s63 = sphi 0, %s49
      %s67 = sphi 0, %s67
      %s69 = sphi 0, %s67
      %s70 = sphi 0, %s69
      %s84 = sphi 0, %s70
      %s90 = sphi 0, %s92
      %s93 = sphi 0, %s90
      %s94 = sphi 0, %s93
      %s110 = sphi 0, %s94
    $region4: #{tpu_custom_call.1} parent=1 // loop_header_branch
      %15 = sbr.rel (%p13) target = $region8
    $region5: #{tpu_custom_call.1} parent=1 // loop_body
      %s17 = ssub.s32 %s12, 1
      %s18 = ssub.s32 %s12, 2
      %s19 = sadd.s32 %s12, 1
      %s20 = ssub.s32 %s12, %s19
      %p21 = scmp.eq.s32.totalorder %s20, 0
      %s23 = sadd.s32 %s22, 1
      %s24 = scalar_select %p21, %s22, %s23
      %p27 = pneg %p21
      %p28 = scmp.eq.s32.totalorder %s12, 1
      %p29 = por %p27, %p28
      %p30 = scmp.ne.s32.totalorder %s22, %s25
      %p31 = scmp.eq.s32.totalorder %s12, 0
      %p32 = por %p30, %p31
      %p33 = scmp.ne.s32.totalorder %s22, %s25
      %p34 = scmp.eq.s32.totalorder %s17, 1
      %p35 = por %p33, %p34
      %p36 = scmp.ne.s32.totalorder %s25, %s26
      %p37 = scmp.eq.s32.totalorder %s17, 0
      %p38 = por %p36, %p37
      %p39 = scmp.ne.s32.totalorder %s25, %s26
      %p40 = scmp.eq.s32.totalorder %s18, 1
      %p41 = por %p39, %p40
      %p43 = scmp.ne.s32.totalorder %s26, %s42
      %p44 = scmp.eq.s32.totalorder %s18, 0
      %p45 = por %p43, %p44
      %s47 = sadd.s32 %s46, 1
      %p50 = scmp.eq.s32.totalorder %s12, 1
      %p51 = scmp.ne.s32.totalorder %s46, %s48
      %p52 = scmp.eq.s32.totalorder %s12, 0
      %p53 = por %p51, %p52
      %p54 = scmp.ne.s32.totalorder %s46, %s48
      %p55 = scmp.eq.s32.totalorder %s17, 1
      %p56 = por %p54, %p55
      %p57 = scmp.ne.s32.totalorder %s48, %s49
      %p58 = scmp.eq.s32.totalorder %s17, 0
      %p59 = por %p57, %p58
      %p60 = scmp.ne.s32.totalorder %s48, %s49
      %p61 = scmp.eq.s32.totalorder %s18, 1
      %p62 = por %p60, %p61
      %p64 = scmp.ne.s32.totalorder %s49, %s63
      %p65 = scmp.eq.s32.totalorder %s18, 0
      %p66 = por %p64, %p65
      %s68 = sadd.s32 %s67, 1
      %p71 = scmp.eq.s32.totalorder %s12, 1
      %p72 = scmp.ne.s32.totalorder %s67, %s69
      %p73 = scmp.eq.s32.totalorder %s12, 0
      %p74 = por %p72, %p73
      %p75 = scmp.ne.s32.totalorder %s67, %s69
      %p76 = scmp.eq.s32.totalorder %s17, 1
      %p77 = por %p75, %p76
      %p78 = scmp.ne.s32.totalorder %s69, %s70
      %p79 = scmp.eq.s32.totalorder %s17, 0
      %p80 = por %p78, %p79
      %p81 = scmp.ne.s32.totalorder %s69, %s70
      %p82 = scmp.eq.s32.totalorder %s18, 1
      %p83 = por %p81, %p82
      %p85 = scmp.ne.s32.totalorder %s70, %s84
      %p86 = scmp.eq.s32.totalorder %s18, 0
      %p87 = por %p85, %p86
      %s88 = ssub.s32 %s12, %s19
      %p89 = scmp.eq.s32.totalorder %s88, 0
      %s91 = sadd.s32 %s90, 1
      %s92 = scalar_select %p89, %s90, %s91
      %p95 = pneg %p89
      %p96 = scmp.eq.s32.totalorder %s12, 1
      %p97 = por %p95, %p96
      %p98 = scmp.ne.s32.totalorder %s90, %s93
      %p99 = scmp.eq.s32.totalorder %s12, 0
      %p100 = por %p98, %p99
      %p101 = scmp.ne.s32.totalorder %s90, %s93
      %p102 = scmp.eq.s32.totalorder %s17, 1
      %p103 = por %p101, %p102
      %p104 = scmp.ne.s32.totalorder %s93, %s94
      %p105 = scmp.eq.s32.totalorder %s17, 0
      %p106 = por %p104, %p105
      %p107 = scmp.ne.s32.totalorder %s93, %s94
      %p108 = scmp.eq.s32.totalorder %s18, 1
      %p109 = por %p107, %p108
      %p111 = scmp.ne.s32.totalorder %s94, %s110
      %p112 = scmp.eq.s32.totalorder %s18, 0
      %p113 = por %p111, %p112
      %p114 = scmp.le.s32.totalorder 1, %s12
      %p115 = scmp.lt.s32.totalorder %s12, 3
      %p116 = pnand %p114, %p115
      %p117 = pneg %p116
      // Predicated region
      $region9: #{tpu_custom_call.1} parent=5 // pred_check
        _
      $region10: #{tpu_custom_call.1} parent=5 // pred_check_branch
        %119 = sbr.rel (%p116) target = $region12
      $region11: #{tpu_custom_call.1} parent=5 // pred_region
        %s120 = ssub.s32 %s12, 1
        // Predicated region
        $region13: #{tpu_custom_call.1} parent=11 // pred_check
          %p121 = pneg %p59
        $region14: #{tpu_custom_call.1} parent=11 // pred_check_branch
          %123 = sbr.rel (%p121) target = $region16
        $region15: #{tpu_custom_call.1} parent=11 // pred_region
          _
        $region16: #{tpu_custom_call.1} parent=11 // pred_fallthru
          _
        // Predicated region
        $region17: #{tpu_custom_call.1} parent=11 // pred_check
          %p124 = pneg %p80
        $region18: #{tpu_custom_call.1} parent=11 // pred_check_branch
          %126 = sbr.rel (%p124) target = $region20
        $region19: #{tpu_custom_call.1} parent=11 // pred_region
          _
        $region20: #{tpu_custom_call.1} parent=11 // pred_fallthru
          _
      $region12: #{tpu_custom_call.1} parent=5 // pred_fallthru
        _
      %p127 = scmp.lt.s32.totalorder %s12, 2
      // Predicated region
      $region21: #{tpu_custom_call.1} parent=5 // pred_check
        %p128 = pneg %p127
      $region22: #{tpu_custom_call.1} parent=5 // pred_check_branch
        %130 = sbr.rel (%p128) target = $region24
      $region23: #{tpu_custom_call.1} parent=5 // pred_region
        // Predicated region
        $region25: #{tpu_custom_call.1} parent=23 // pred_check
          %p131 = pneg %p32
        $region26: #{tpu_custom_call.1} parent=23 // pred_check_branch
          %133 = sbr.rel (%p131) target = $region28
        $region27: #{tpu_custom_call.1} parent=23 // pred_region
          %p134 = scmp.lt.s32.totalorder %s12, 1
          %s135 = scalar_select %p134, %s12, 1
          %s136 = smul.addr %s135, 4
          %s137 = scalar_lea.vmem %s0, %s136
        $region28: #{tpu_custom_call.1} parent=23 // pred_fallthru
          _
      $region24: #{tpu_custom_call.1} parent=5 // pred_fallthru
        _
      %p138 = scmp.le.s32.totalorder 1, %s12
      %p139 = scmp.lt.s32.totalorder %s12, 3
      %p140 = pnand %p138, %p139
      %p141 = pneg %p140
      // Predicated region
      $region29: #{tpu_custom_call.1} parent=5 // pred_check
        _
      $region30: #{tpu_custom_call.1} parent=5 // pred_check_branch
        %143 = sbr.rel (%p140) target = $region32
      $region31: #{tpu_custom_call.1} parent=5 // pred_region
        %s144 = ssub.s32 %s12, 1
        %p145 = scmp.lt.s32.totalorder %s17, 1
        %s146 = scalar_select %p145, %s17, 1
        %s147 = smul.addr %s146, 4
        %s148 = scalar_lea.vmem %s0, %s147
        %p149 = pneg %p38
        %p150 = pneg %p35
        %p151 = pneg %p59
        %p152 = pneg %p56
        %p153 = pneg %p80
        %p154 = pneg %p77
        %p155 = pneg %p106
        %p156 = pneg %p103
        %s157 = sand.u32 %s93, 1
        %s158 = scalar_lea.sflag [#allocation3], %s157
        %s159 = sand.u32 %s93, 1
        %s160 = smul.addr %s159, 4
        %s161 = scalar_lea.vmem [#allocation2], %s160
        %p162 = scmp.lt.s32.totalorder %s17, 1
        %s163 = scalar_select %p162, %s17, 1
        %s164 = smul.addr %s163, 4
        %s165 = scalar_lea.vmem %s0, %s164
        %v166 = vld [vmem:[%s165] sm:$0xf]
        %v167 = vld [vmem:[%s1] sm:$0xff]
        %v168 = vld [vmem:[%s1 + $0x8] sm:$0x3]
        %170 = vset.pattern.permute.xlu0 4
        %171 = vperm.xlu0 %170, %v167
        %v172 = vpop.permute.xlu0 %171
        %175 = vset.pattern.permute.xlu0 4
        %176 = vperm.xlu0 %175, %v168
        %v177 = vpop.permute.xlu0 %176
        %vm179 = vcmask 31744
        %v180 = vsel %vm179, %v167, 0
        %v182 = vsel %vm179, %v168, 0
        %vm184 = vcmask 1043456
        %v186 = vsel %vm184, %v166, 0
        %188 = vmatprep.subr.mxu0 0.0
        %189 = vmatpush1.msra.mxu0 %v186
        %190 = vmatprep.subr.mxu0 0.0
        %191 = vmatpush1.msra.mxu0 0.0
        %192 = vmatprep.subr.mxu0 0.0
        %193 = vmatpush1.msra.mxu0 0.0
        %194 = vmatprep.subr.mxu0 0.0
        %195 = vmatpush1.msra.mxu0 0.0
        %196 = vmatprep.subr.mxu0 0.0
        %197 = vmatpush1.msra.mxu0 0.0
        %198 = vmatprep.subr.mxu0 0.0
        %199 = vmatpush1.msra.mxu0 0.0
        %200 = vmatprep.subr.mxu0 0.0
        %201 = vmatpush1.msra.mxu0 0.0
        %202 = vmatprep.subr.mxu0 0.0
        %203 = vmatpush1.msra.mxu0 0.0
        %204 = vmatprep.subr.mxu0 0.0
        %205 = vmatpush1.msra.mxu0 0.0
        %206 = vmatprep.subr.mxu0 0.0
        %207 = vmatpush1.msra.mxu0 0.0
        %208 = vmatprep.subr.mxu0 0.0
        %209 = vmatpush1.msra.mxu0 0.0
        %210 = vmatprep.subr.mxu0 0.0
        %211 = vmatpush1.msra.mxu0 0.0
        %212 = vmatprep.subr.mxu0 0.0
        %213 = vmatpush1.msra.mxu0 0.0
        %214 = vmatprep.subr.mxu0 0.0
        %215 = vmatpush1.msra.mxu0 0.0
        %216 = vmatprep.subr.mxu0 0.0
        %217 = vmatpush1.msra.mxu0 0.0
        %218 = vmatprep.subr.mxu0 0.0
        %219 = vmatpush1.msra.mxu0 0.0
        %220 = vmatprep.subr.mxu0 0.0
        %221 = vmatpush1.msra.mxu0 0.0
        %222 = vmatprep.subr.mxu0 0.0
        %223 = vmatpush1.msra.mxu0 0.0
        %224 = vmatprep.subr.mxu0 0.0
        %225 = vmatpush1.msra.mxu0 0.0
        %226 = vmatprep.subr.mxu0 0.0
        %227 = vmatpush1.msra.mxu0 0.0
        %228 = vmatprep.subr.mxu0 0.0
        %229 = vmatpush1.msra.mxu0 0.0
        %230 = vmatprep.subr.mxu0 0.0
        %231 = vmatpush1.msra.mxu0 0.0
        %232 = vmatprep.subr.mxu0 0.0
        %233 = vmatpush1.msra.mxu0 0.0
        %234 = vmatprep.subr.mxu0 0.0
        %235 = vmatpush1.msra.mxu0 0.0
        %236 = vmatprep.subr.mxu0 0.0
        %237 = vmatpush1.msra.mxu0 0.0
        %238 = vmatprep.subr.mxu0 0.0
        %239 = vmatpush1.msra.mxu0 0.0
        %240 = vmatprep.subr.mxu0 0.0
        %241 = vmatpush1.msra.mxu0 0.0
        %242 = vmatprep.subr.mxu0 0.0
        %243 = vmatpush1.msra.mxu0 0.0
        %244 = vmatprep.subr.mxu0 0.0
        %245 = vmatpush1.msra.mxu0 0.0
        %246 = vmatprep.subr.mxu0 0.0
        %247 = vmatpush1.msra.mxu0 0.0
        %248 = vmatprep.subr.mxu0 0.0
        %249 = vmatpush1.msra.mxu0 0.0
        %250 = vmatprep.subr.mxu0 0.0
        %251 = vmatpush1.msra.mxu0 0.0
        %252 = vmatprep.mubr.f32.mxu0 0.0
        %253 = vmatmul.mubr.f32.gmra.mrb[0].mxu0 %v180
        %v254 = vpop.f32.mrb[0].mxu0
        %v255 = vadd.f32 %v172, %v254
        %v256 = vpop.f32.mrb[0].mxu0
        %257 = vmatprep.mubr.f32.mxu0 0.0
        %258 = vmatmul.mubr.f32.gmra.mrb[0].mxu0 %v182
        %v259 = vpop.f32.mrb[0].mxu0
        %v260 = vadd.f32 %v177, %v259
        %v261 = vpop.f32.mrb[0].mxu0
        %262 = vdwg.mxu0
        %v263 = vmax.f32 %v255, 0.0
        %v264 = vmax.f32 %v260, 0.0
        %v265 = vld [vmem:[%s2] sm:$0x7]
        %267 = vset.pattern.permute.xlu0 10
        %268 = vperm.xlu0 %267, %v265
        %v269 = vpop.permute.xlu0 %268
        %vm271 = vcmask 80896
        %v272 = vsel %vm271, %v265, 0
        %vm274 = vcmask 1041408
        %v276 = vsel %vm274, %v264, 0
        %278 = vmatprep.subr.mxu0 0.0
        %279 = vmatpush1.msra.mxu0 %v263
        %280 = vmatprep.subr.mxu0 0.0
        %281 = vmatpush1.msra.mxu0 %v276
        %282 = vmatprep.subr.mxu0 0.0
        %283 = vmatpush1.msra.mxu0 0.0
        %284 = vmatprep.subr.mxu0 0.0
        %285 = vmatpush1.msra.mxu0 0.0
        %286 = vmatprep.subr.mxu0 0.0
        %287 = vmatpush1.msra.mxu0 0.0
        %288 = vmatprep.subr.mxu0 0.0
        %289 = vmatpush1.msra.mxu0 0.0
        %290 = vmatprep.subr.mxu0 0.0
        %291 = vmatpush1.msra.mxu0 0.0
        %292 = vmatprep.subr.mxu0 0.0
        %293 = vmatpush1.msra.mxu0 0.0
        %294 = vmatprep.subr.mxu0 0.0
        %295 = vmatpush1.msra.mxu0 0.0
        %296 = vmatprep.subr.mxu0 0.0
        %297 = vmatpush1.msra.mxu0 0.0
        %298 = vmatprep.subr.mxu0 0.0
        %299 = vmatpush1.msra.mxu0 0.0
        %300 = vmatprep.subr.mxu0 0.0
        %301 = vmatpush1.msra.mxu0 0.0
        %302 = vmatprep.subr.mxu0 0.0
        %303 = vmatpush1.msra.mxu0 0.0
        %304 = vmatprep.subr.mxu0 0.0
        %305 = vmatpush1.msra.mxu0 0.0
        %306 = vmatprep.subr.mxu0 0.0
        %307 = vmatpush1.msra.mxu0 0.0
        %308 = vmatprep.subr.mxu0 0.0
        %309 = vmatpush1.msra.mxu0 0.0
        %310 = vmatprep.subr.mxu0 0.0
        %311 = vmatpush1.msra.mxu0 0.0
        %312 = vmatprep.subr.mxu0 0.0
        %313 = vmatpush1.msra.mxu0 0.0
        %314 = vmatprep.subr.mxu0 0.0
        %315 = vmatpush1.msra.mxu0 0.0
        %316 = vmatprep.subr.mxu0 0.0
        %317 = vmatpush1.msra.mxu0 0.0
        %318 = vmatprep.subr.mxu0 0.0
        %319 = vmatpush1.msra.mxu0 0.0
        %320 = vmatprep.subr.mxu0 0.0
        %321 = vmatpush1.msra.mxu0 0.0
        %322 = vmatprep.subr.mxu0 0.0
        %323 = vmatpush1.msra.mxu0 0.0
        %324 = vmatprep.subr.mxu0 0.0
        %325 = vmatpush1.msra.mxu0 0.0
        %326 = vmatprep.subr.mxu0 0.0
        %327 = vmatpush1.msra.mxu0 0.0
        %328 = vmatprep.subr.mxu0 0.0
        %329 = vmatpush1.msra.mxu0 0.0
        %330 = vmatprep.subr.mxu0 0.0
        %331 = vmatpush1.msra.mxu0 0.0
        %332 = vmatprep.subr.mxu0 0.0
        %333 = vmatpush1.msra.mxu0 0.0
        %334 = vmatprep.subr.mxu0 0.0
        %335 = vmatpush1.msra.mxu0 0.0
        %336 = vmatprep.subr.mxu0 0.0
        %337 = vmatpush1.msra.mxu0 0.0
        %338 = vmatprep.subr.mxu0 0.0
        %339 = vmatpush1.msra.mxu0 0.0
        %340 = vmatprep.subr.mxu0 0.0
        %341 = vmatpush1.msra.mxu0 0.0
        %342 = vmatprep.mubr.f32.mxu0 0.0
        %343 = vmatmul.mubr.f32.gmra.mrb[0].mxu0 %v272
        %v344 = vpop.f32.mrb[0].mxu0
        %v345 = vadd.f32 %v269, %v344
        %v346 = vpop.f32.mrb[0].mxu0
        %347 = vdwg.mxu0
        %348 = vst [vmem:[%s161] sm:$0x7] %v345
        %s349 = sand.u32 %s93, 1
        %s350 = scalar_lea.sflag [#allocation3], %s349
        %s351 = sand.u32 %s93, 1
        %s352 = smul.addr %s351, 4
        %s353 = scalar_lea.vmem [#allocation2], %s352
        // Predicated region
        $region33: #{tpu_custom_call.1} parent=31 // pred_check
          %p354 = pneg %p103
        $region34: #{tpu_custom_call.1} parent=31 // pred_check_branch
          %356 = sbr.rel (%p354) target = $region36
        $region35: #{tpu_custom_call.1} parent=31 // pred_region
          %s358 = ssub.s32 64, 64
          %359 = vsyncadd %s350, %s358
          %s360 = smul.addr %s17, 64
          %s361 = scalar_lea.hbm %s3, %s360
          %s363 = sshll.u32 %s353, 4
          %s364 = int_to_ptr.vmem [resolvable:$true] %s363
          %366 = dma.vmem_to_hbm [thread:$0]  %s364, 64, %s361, %s350
        $region36: #{tpu_custom_call.1} parent=31 // pred_fallthru
          _
      $region32: #{tpu_custom_call.1} parent=5 // pred_fallthru
        _
      %p367 = scmp.le.s32.totalorder 2, %s12
      // Predicated region
      $region37: #{tpu_custom_call.1} parent=5 // pred_check
        %p368 = pneg %p367
      $region38: #{tpu_custom_call.1} parent=5 // pred_check_branch
        %370 = sbr.rel (%p368) target = $region40
      $region39: #{tpu_custom_call.1} parent=5 // pred_region
        %s371 = ssub.s32 %s12, 2
        // Predicated region
        $region41: #{tpu_custom_call.1} parent=39 // pred_check
          %p372 = pneg %p109
        $region42: #{tpu_custom_call.1} parent=39 // pred_check_branch
          %374 = sbr.rel (%p372) target = $region44
        $region43: #{tpu_custom_call.1} parent=39 // pred_region
          %s375 = sand.u32 %s94, 1
          %s376 = scalar_lea.sflag [#allocation3], %s375
          %s377 = sand.u32 %s94, 1
          %s378 = smul.addr %s377, 4
          %s379 = scalar_lea.vmem [#allocation2], %s378
          %380 = dma.done %s376, 64
        $region44: #{tpu_custom_call.1} parent=39 // pred_fallthru
          _
      $region40: #{tpu_custom_call.1} parent=5 // pred_fallthru
        _
    $region6: #{tpu_custom_call.1} parent=1 // loop_footer
      %s16 = sadd.s32 1, %s12
    $region7: #{tpu_custom_call.1} parent=1 // loop_footer_branch
      %11 = sbr.rel target = $region3
    $region8: #{tpu_custom_call.1} parent=1 // loop_exit
      _
    %381 = vsyncpa [#allocation3], 1
    %s382 = scalar_lea.sflag [#allocation3], 1
    %383 = vsyncpa %s382, 1

</llo_original>
